<compile_context>
chip_gen: v7x
topology: tpu7x:2x2x1
jax: 0.10.0
libtpu: 0.0.40
codegen_flags: <defaults>
</compile_context>

<pallas_src>
import functools

import jax
import jax.numpy as jnp
from jax.experimental import pallas as pl
from jax.experimental.pallas import tpu as pltpu


def aft_full_kernel(ep_ref, e_ref, gate_ref, o_ref, *, approx_recip):
    # ep_ref:   (tq, n)     exp(pos - rowmax(pos)) rows for this query tile
    # e_ref:    (n, 2*dim)  [exp(k - mk) * v | exp(k - mk)] for this batch element
    # gate_ref: (tq, dim)   sigmoid(q) for this (batch, query-tile)
    # o_ref:    (tq, dim)   output tile
    dim = o_ref.shape[-1]
    nd = jnp.dot(ep_ref[...], e_ref[...],
                 preferred_element_type=jnp.float32)        # (tq, 2*dim) on the MXU
    num = nd[:, :dim]
    den = nd[:, dim:]
    if approx_recip:
        out = num * pl.reciprocal(den, approx=True)          # EUP slot, ~free
    else:
        out = num / den                                      # exact (f32 path)
    o_ref[...] = (gate_ref[...].astype(jnp.float32) * out).astype(o_ref.dtype)


def _pick_tq(n, target, sub):
    """Largest multiple of `sub` that divides n and is <= target (else n)."""
    t = min(n, target)
    t -= t % sub
    while t >= sub:
        if n % t == 0:
            return t
        t -= sub
    return n


def aft_full(x, wqkv, bqkv, pos_bias, *, tq=None, compute_dtype=None):
    """AFT-full forward.

    x:        (bs, n, dim)
    wqkv:     (dim, 3*dim)   fused, pre-transposed [Wq | Wk | Wv]
    bqkv:     (1, 3*dim)     fused bias
    pos_bias: (n, n)         position_biases[query_pos, key_pos]

    Pass bf16 x / wqkv (or compute_dtype=jnp.bfloat16) for full-rate MXU and a
    halved pos / e_scr HBM stream on v6e/v7x.
    """
    bs, n, dim = x.shape
    assert wqkv.shape == (dim, 3 * dim)
    assert bqkv.shape == (1, 3 * dim)
    assert pos_bias.shape == (n, n)

    cdt = jnp.dtype(compute_dtype) if compute_dtype is not None else jnp.dtype(x.dtype)
    out_dtype = x.dtype

    # ---- cheap O(n*dim^2) / O(n*dim) precompute, hoisted to plain XLA ----------
    # (Per review: avoids an un-tiled per-batch prologue with hidden VMEM
    #  temporaries inside the kernel; the O(n^2*dim) reduction stays in Pallas.)
    qkv = jnp.dot(x, wqkv, preferred_element_type=jnp.float32) + bqkv
    q = qkv[..., :dim]
    k = qkv[..., dim:2 * dim]
    v = qkv[..., 2 * dim:]

    gate = jax.nn.sigmoid(q).astype(out_dtype)                    # pre-activated, narrow
    mk = jnp.max(k, axis=1, keepdims=True)                        # (bs, 1, dim)
    ek = jnp.exp(k - mk)                                          # <= 1
    e = jnp.concatenate([ek * v, ek], axis=-1).astype(cdt)        # (bs, n, 2*dim)

    mp = jnp.max(pos_bias, axis=1, keepdims=True)                 # (n, 1)
    ep = jnp.exp(pos_bias.astype(jnp.float32) - mp).astype(cdt)   # (n, n), <= 1

    # ---- tiling / VMEM budgeting ------------------------------------------------
    isz = jnp.dtype(cdt).itemsize
    gsz = jnp.dtype(gate.dtype).itemsize
    osz = jnp.dtype(out_dtype).itemsize

    try:
        kind = jax.devices()[0].device_kind.lower()
    except Exception:
        kind = ""
    vmem_cap = (56 << 20) if "v7" in kind else (100 << 20)   # v7x: 64 MiB physical

    if tq is None:
        target = 128 if "v5" in kind else 256                # v5e: 4x128 MXU
        # keep the double-buffered ep slab within ~1/4 of the VMEM budget
        rows_by_vmem = max(8, (vmem_cap // 4) // max(1, 2 * n * isz))
        target = min(target, rows_by_vmem)
        sub = 16 if min(isz, osz) == 2 else 8
        tq = _pick_tq(n, target, sub)
    assert n % tq == 0
    n_qt = n // tq

    vmem_need = (2 * tq * n * isz            # ep tile (double-buffered)
                 + 2 * n * 2 * dim * isz     # e slab (double-buffered across batch)
                 + 2 * tq * dim * gsz        # gate tile
                 + 2 * tq * dim * osz)       # out tile
    vmem_limit = max(int(vmem_need * 1.25) + (2 << 20), 16 << 20)
    if vmem_need <= vmem_cap:
        vmem_limit = min(vmem_limit, vmem_cap)

    flops = 2 * bs * n * n * 2 * dim                     # the per-tile MXU matmuls
    transcendentals = bs * n * dim                       # divide / reciprocal
    bytes_accessed = (bs * n * n * isz                   # ep re-streamed per batch
                      + bs * n * 2 * dim * isz           # e
                      + bs * n * dim * gsz               # gate
                      + bs * n * dim * osz)              # output

    grid_spec = pltpu.PrefetchScalarGridSpec(
        num_scalar_prefetch=0,
        grid=(bs, n_qt),
        in_specs=[
            pl.BlockSpec((tq, n), lambda b, qt: (qt, 0)),               # ep rows
            pl.BlockSpec((None, n, 2 * dim), lambda b, qt: (b, 0, 0)),  # [ek*v | ek]
            pl.BlockSpec((None, tq, dim), lambda b, qt: (b, qt, 0)),    # gate
        ],
        out_specs=pl.BlockSpec((None, tq, dim), lambda b, qt: (b, qt, 0)),
    )
    # TODO(synk): for production dim < 128, fold batch / several query tiles into
    # the lane axis (or pad dim to 128) so output stores are unmasked vst.

    kernel = functools.partial(
        aft_full_kernel,
        approx_recip=(jnp.dtype(cdt) != jnp.dtype(jnp.float32)))

    return pl.pallas_call(
        kernel,
        out_shape=jax.ShapeDtypeStruct((bs, n, dim), out_dtype),
        grid_spec=grid_spec,
        compiler_params=pltpu.CompilerParams(
            dimension_semantics=("parallel", "parallel"),   # no cross-step scratch
            vmem_limit_bytes=int(vmem_limit)),
        cost_estimate=pl.CostEstimate(
            flops=int(flops),
            transcendentals=int(transcendentals),
            bytes_accessed=int(bytes_accessed)),
    )(ep, e, gate)


def aft_full_reference(x, wq, bq, wk, bk, wv, bv, pos_bias):
    # Pure-JAX mirror of the PyTorch _forward_original path (for verification).
    q = x @ wq + bq
    k = x @ wk + bk
    v = x @ wv + bv
    logits = k[None, :, :, :] + pos_bias[:, None, :, None]   # (n_q, bs, n_k, dim)
    m = jnp.max(logits, axis=2, keepdims=True)
    e = jnp.exp(logits - m)
    num = jnp.sum(e * v[None, :, :, :], axis=2)              # (n_q, bs, dim)
    den = jnp.sum(e, axis=2)
    out = num / den
    return jax.nn.sigmoid(q) * jnp.transpose(out, (1, 0, 2))


if __name__ == "__main__":
    bs, n, dim = 2, 8, 32   # n <= module default 36 -> original (non-chunked) path

    key = jax.random.PRNGKey(0)
    kx, kwq, kbq, kwk, kbk, kwv, kbv, kpos = jax.random.split(key, 8)

    x = jax.random.normal(kx, (bs, n, dim), dtype=jnp.float32)

    # torch.nn.Linear-style init: uniform(-1/sqrt(fan_in), 1/sqrt(fan_in)).
    bound = 1.0 / (dim ** 0.5)
    def uni(k, shape):
        return jax.random.uniform(k, shape, jnp.float32, -bound, bound)

    wq = uni(kwq, (dim, dim)); bq = uni(kbq, (1, dim))
    wk = uni(kwk, (dim, dim)); bk = uni(kbk, (1, dim))
    wv = uni(kwv, (dim, dim)); bv = uni(kbv, (1, dim))

    wqkv = jnp.concatenate([wq, wk, wv], axis=1)   # (dim, 3*dim)
    bqkv = jnp.concatenate([bq, bk, bv], axis=1)   # (1, 3*dim)

    # simple=True init -> zero position biases; also test a non-trivial bias
    # matrix to exercise the separable-max rewrite.
    pos_zero = jnp.zeros((n, n), dtype=jnp.float32)
    pos_rand = 0.5 * jax.random.normal(kpos, (n, n), dtype=jnp.float32)

    tol = dict(atol=1e-4, rtol=1e-4)
    for pos in (pos_zero, pos_rand):
        y = aft_full(x, wqkv, bqkv, pos)
        jax.block_until_ready(y)
        y_ref = aft_full_reference(x, wq, bq[0], wk, bk[0], wv, bv[0], pos)
        assert y.shape == (bs, n, dim)
        assert jnp.allclose(y, y_ref, **tol), "f32 kernel mismatch vs reference"

    # bf16 MXU-operand path (full-rate MXU + halved HBM stream on v6e/v7x);
    # loose smoke check vs the f32 reference.
    y_bf = aft_full(x.astype(jnp.bfloat16), wqkv.astype(jnp.bfloat16), bqkv, pos_rand)
    jax.block_until_ready(y_bf)
    y_ref = aft_full_reference(x, wq, bq[0], wk, bk[0], wv, bv[0], pos_rand)
    assert jnp.allclose(y_bf.astype(jnp.float32), y_ref, atol=1e-1, rtol=1e-1), \
        "bf16 kernel mismatch vs reference"

    print("KERNEL_OK")
</pallas_src>

<mosaic_0001>
module attributes {stable_mosaic.version = 11 : i64} {
  func.func @aft_full_kernel(%arg0: i32, %arg1: i32, %arg2: memref<8x8xf32, #tpu.memory_space<vmem>>, %arg3: memref<1x8x64xf32, #tpu.memory_space<vmem>>, %arg4: memref<1x8x32xf32, #tpu.memory_space<vmem>>, %arg5: memref<1x8x32xf32, #tpu.memory_space<vmem>>) attributes {dimension_semantics = [#tpu.dimension_semantics<parallel>, #tpu.dimension_semantics<parallel>], iteration_bounds = array<i64: 2, 1>, scalar_prefetch = 0 : i64, scratch_operands = 0 : i64, tpu.core_type = #tpu.core_type<tc>, window_params = [{transform_indices = @transform_0, window_bounds = array<i64: 8, 8>}, {transform_indices = @transform_1, window_bounds = array<i64: 1, 8, 64>}, {transform_indices = @transform_2, window_bounds = array<i64: 1, 8, 32>}, {transform_indices = @transform_3, window_bounds = array<i64: 1, 8, 32>}]} {
    %c0 = arith.constant 0 : index
    %c0_0 = arith.constant 0 : index
    %0 = vector.load %arg2[%c0, %c0_0] : memref<8x8xf32, #tpu.memory_space<vmem>>, vector<8x8xf32>
    %c0_1 = arith.constant 0 : index
    %c0_2 = arith.constant 0 : index
    %c0_3 = arith.constant 0 : index
    %1 = vector.load %arg3[%c0_1, %c0_2, %c0_3] : memref<1x8x64xf32, #tpu.memory_space<vmem>>, vector<1x8x64xf32>
    %2 = vector.shape_cast %1 : vector<1x8x64xf32> to vector<8x64xf32>
    %cst = arith.constant dense<0.000000e+00> : vector<8x64xf32>
    %3 = tpu.matmul %0, %2, %cst {dimension_numbers = #tpu.dot_dimension_numbers<[1], [0], [0], [1], [0, 0, 1, 1], [], []>} : vector<8x8xf32>, vector<8x64xf32>, vector<8x64xf32> -> vector<8x64xf32>
    %4 = vector.extract_strided_slice %3 {offsets = [0, 0], sizes = [8, 32], strides = [1, 1]} : vector<8x64xf32> to vector<8x32xf32>
    %5 = vector.extract_strided_slice %3 {offsets = [0, 32], sizes = [8, 32], strides = [1, 1]} : vector<8x64xf32> to vector<8x32xf32>
    %6 = arith.divf %4, %5 : vector<8x32xf32>
    %c0_4 = arith.constant 0 : index
    %c0_5 = arith.constant 0 : index
    %c0_6 = arith.constant 0 : index
    %7 = vector.load %arg4[%c0_4, %c0_5, %c0_6] : memref<1x8x32xf32, #tpu.memory_space<vmem>>, vector<1x8x32xf32>
    %8 = vector.shape_cast %7 : vector<1x8x32xf32> to vector<8x32xf32>
    %9 = arith.mulf %8, %6 : vector<8x32xf32>
    %c0_7 = arith.constant 0 : index
    %c0_8 = arith.constant 0 : index
    %c0_9 = arith.constant 0 : index
    %10 = vector.load %arg5[%c0_7, %c0_8, %c0_9] : memref<1x8x32xf32, #tpu.memory_space<vmem>>, vector<1x8x32xf32>
    %11 = vector.shape_cast %10 : vector<1x8x32xf32> to vector<8x32xf32>
    %12 = vector.shape_cast %9 : vector<8x32xf32> to vector<1x8x32xf32>
    tpu.vector_store %arg5[%c0_7, %c0_8, %c0_9], %12 {strides = array<i32>} : memref<1x8x32xf32, #tpu.memory_space<vmem>>, vector<1x8x32xf32>,
    return
  }
  func.func @transform_0(%arg0: i32, %arg1: i32) -> (i32, i32) {
    %c0_i32 = arith.constant 0 : i32
    %c0_i32_0 = arith.constant 0 : i32
    return %arg1, %c0_i32 : i32, i32
  }
  func.func @transform_1(%arg0: i32, %arg1: i32) -> (i32, i32, i32) {
    %c0_i32 = arith.constant 0 : i32
    %c0_i32_0 = arith.constant 0 : i32
    %c0_i32_1 = arith.constant 0 : i32
    return %arg0, %c0_i32, %c0_i32_0 : i32, i32, i32
  }
  func.func @transform_2(%arg0: i32, %arg1: i32) -> (i32, i32, i32) {
    %c0_i32 = arith.constant 0 : i32
    %c0_i32_0 = arith.constant 0 : i32
    return %arg0, %arg1, %c0_i32 : i32, i32, i32
  }
  func.func @transform_3(%arg0: i32, %arg1: i32) -> (i32, i32, i32) {
    %c0_i32 = arith.constant 0 : i32
    %c0_i32_0 = arith.constant 0 : i32
    return %arg0, %arg1, %c0_i32 : i32, i32, i32
  }
}

</mosaic_0001>

<llo_original>
// kernel: tpu_custom_call.1
$region0: #{tpu_custom_call.1}
  #allocation0 [shape = 'u32[]', space=smem, size = 0x4, offset = 0x4, fixed_abs, tag = 'smem constant byte address 0x4 - core index']
  #allocation1 [shape = 'u32[144,128]{1,0:T(1,128)}', space=vmem, size = 0x12000, scoped, tag = 'internal scratch']
  %s0 = inlined_call_operand.hbm [shape: f32[8,8], index: 0, kind: input, shape index: {}]
  %s1 = inlined_call_operand.hbm [shape: f32[2,8,64], index: 1, kind: input, shape index: {}]
  %s2 = inlined_call_operand.hbm [shape: f32[2,8,32], index: 2, kind: input, shape index: {}]
  %s3 = inlined_call_operand.hbm [shape: f32[2,8,32], index: 3, kind: output, shape index: {}]
  %s4 = sld [smem:[#allocation0]]
  $region57: #{tpu_custom_call.1} parent=0
    _
  %s6 = ssub.s32 1, %s4
  %s7 = scalar_select 0, %s6, %s4
  $region1: #{tpu_custom_call.1} parent=0
    #allocation2 [shape = 'u8[4096]{0}', space=vmem, size = 0x1000, scoped, tag = 'input window, operand 0, single buffered']
    #allocation3 [shape = 's32[2]{0}', space=sflag, size = 0x8, scoped, tag = 'scoped memory for tpu_custom_call.1']
    #allocation4 [shape = 's32[2]{0}', space=sflag, size = 0x8, scoped, tag = 'scoped memory for tpu_custom_call.1']
    #allocation5 [shape = 'u8[8192]{0}', space=vmem, size = 0x2000, scoped, tag = 'input window, operand 1']
    #allocation6 [shape = 's32[2]{0}', space=sflag, size = 0x8, scoped, tag = 'scoped memory for tpu_custom_call.1']
    #allocation7 [shape = 'u8[8192]{0}', space=vmem, size = 0x2000, scoped, tag = 'input window, operand 2']
    #allocation8 [shape = 'u8[8192]{0}', space=vmem, size = 0x2000, scoped, tag = 'output window, operand 0']
    %8 = vsyncpa [#allocation3], 0
    %9 = vsyncpa [#allocation6], 0
    %s10 = scalar_lea.sflag [#allocation6], 1
    %11 = vsyncpa %s10, 0
    %12 = vsyncpa [#allocation4], 0
    %s13 = scalar_lea.sflag [#allocation4], 1
    %14 = vsyncpa %s13, 0
    loop: start=0, step=1, limit=4
    $region2: #{tpu_custom_call.1} parent=1 // loop_pre_header
      _
    $region3: #{tpu_custom_call.1} parent=1 // loop_header
      %s16 = sphi 0, %s20
      %p17 = scmp.ge.s32.totalorder %s16, 4
      %s23 = sphi 0, %s35
      %s24 = sphi 0, %s31
      %s25 = sphi 0, %s23
      %s26 = sphi 0, %s24
      %s27 = sphi 0, %s25
      %s28 = sphi 0, %s26
      %s38 = sphi 0, %s40
      %s41 = sphi 0, %s38
      %s42 = sphi 0, %s41
      %s58 = sphi 0, %s42
      %s64 = sphi 0, %s66
      %s67 = sphi 0, %s64
      %s68 = sphi 0, %s67
      %s84 = sphi 0, %s68
      %s92 = sphi 0, %s94
      %s95 = sphi 0, %s92
      %s96 = sphi 0, %s95
      %s112 = sphi 0, %s96
      %s120 = sphi 0, %s122
      %s123 = sphi 0, %s120
      %s124 = sphi 0, %s123
      %s140 = sphi 0, %s124
    $region4: #{tpu_custom_call.1} parent=1 // loop_header_branch
      %19 = sbr.rel (%p17) target = $region8
    $region5: #{tpu_custom_call.1} parent=1 // loop_body
      %s21 = ssub.s32 %s16, 1
      %s22 = ssub.s32 %s16, 2
      %s29 = sadd.s32 1, %s24
      %p30 = scmp.ge.s32.totalorder %s29, 1
      %s31 = scalar_select %p30, 0, %s29
      %s32 = sadd.s32 1, %s23
      %s33 = scalar_select %p30, %s32, %s23
      %p34 = scmp.ge.s32.totalorder %s33, 2
      %s35 = scalar_select %p34, 0, %s33
      %s36 = ssub.s32 %s24, %s31
      %p37 = scmp.eq.s32.totalorder %s36, 0
      %s39 = sadd.s32 %s38, 1
      %s40 = scalar_select %p37, %s38, %s39
      %p43 = pneg %p37
      %p44 = scmp.eq.s32.totalorder %s16, 1
      %p45 = por %p43, %p44
      %p46 = scmp.ne.s32.totalorder %s38, %s41
      %p47 = scmp.eq.s32.totalorder %s16, 0
      %p48 = por %p46, %p47
      %p49 = scmp.ne.s32.totalorder %s38, %s41
      %p50 = scmp.eq.s32.totalorder %s21, 1
      %p51 = por %p49, %p50
      %p52 = scmp.ne.s32.totalorder %s41, %s42
      %p53 = scmp.eq.s32.totalorder %s21, 0
      %p54 = por %p52, %p53
      %p55 = scmp.ne.s32.totalorder %s41, %s42
      %p56 = scmp.eq.s32.totalorder %s22, 1
      %p57 = por %p55, %p56
      %p59 = scmp.ne.s32.totalorder %s42, %s58
      %p60 = scmp.eq.s32.totalorder %s22, 0
      %p61 = por %p59, %p60
      %s62 = ssub.s32 %s23, %s35
      %p63 = scmp.eq.s32.totalorder %s62, 0
      %s65 = sadd.s32 %s64, 1
      %s66 = scalar_select %p63, %s64, %s65
      %p69 = pneg %p63
      %p70 = scmp.eq.s32.totalorder %s16, 1
      %p71 = por %p69, %p70
      %p72 = scmp.ne.s32.totalorder %s64, %s67
      %p73 = scmp.eq.s32.totalorder %s16, 0
      %p74 = por %p72, %p73
      %p75 = scmp.ne.s32.totalorder %s64, %s67
      %p76 = scmp.eq.s32.totalorder %s21, 1
      %p77 = por %p75, %p76
      %p78 = scmp.ne.s32.totalorder %s67, %s68
      %p79 = scmp.eq.s32.totalorder %s21, 0
      %p80 = por %p78, %p79
      %p81 = scmp.ne.s32.totalorder %s67, %s68
      %p82 = scmp.eq.s32.totalorder %s22, 1
      %p83 = por %p81, %p82
      %p85 = scmp.ne.s32.totalorder %s68, %s84
      %p86 = scmp.eq.s32.totalorder %s22, 0
      %p87 = por %p85, %p86
      %s88 = ssub.s32 %s23, %s35
      %s89 = ssub.s32 %s24, %s31
      %s90 = sor.u32 %s88, %s89
      %p91 = scmp.eq.s32.totalorder %s90, 0
      %s93 = sadd.s32 %s92, 1
      %s94 = scalar_select %p91, %s92, %s93
      %p97 = pneg %p91
      %p98 = scmp.eq.s32.totalorder %s16, 1
      %p99 = por %p97, %p98
      %p100 = scmp.ne.s32.totalorder %s92, %s95
      %p101 = scmp.eq.s32.totalorder %s16, 0
      %p102 = por %p100, %p101
      %p103 = scmp.ne.s32.totalorder %s92, %s95
      %p104 = scmp.eq.s32.totalorder %s21, 1
      %p105 = por %p103, %p104
      %p106 = scmp.ne.s32.totalorder %s95, %s96
      %p107 = scmp.eq.s32.totalorder %s21, 0
      %p108 = por %p106, %p107
      %p109 = scmp.ne.s32.totalorder %s95, %s96
      %p110 = scmp.eq.s32.totalorder %s22, 1
      %p111 = por %p109, %p110
      %p113 = scmp.ne.s32.totalorder %s96, %s112
      %p114 = scmp.eq.s32.totalorder %s22, 0
      %p115 = por %p113, %p114
      %s116 = ssub.s32 %s23, %s35
      %s117 = ssub.s32 %s24, %s31
      %s118 = sor.u32 %s116, %s117
      %p119 = scmp.eq.s32.totalorder %s118, 0
      %s121 = sadd.s32 %s120, 1
      %s122 = scalar_select %p119, %s120, %s121
      %p125 = pneg %p119
      %p126 = scmp.eq.s32.totalorder %s16, 1
      %p127 = por %p125, %p126
      %p128 = scmp.ne.s32.totalorder %s120, %s123
      %p129 = scmp.eq.s32.totalorder %s16, 0
      %p130 = por %p128, %p129
      %p131 = scmp.ne.s32.totalorder %s120, %s123
      %p132 = scmp.eq.s32.totalorder %s21, 1
      %p133 = por %p131, %p132
      %p134 = scmp.ne.s32.totalorder %s123, %s124
      %p135 = scmp.eq.s32.totalorder %s21, 0
      %p136 = por %p134, %p135
      %p137 = scmp.ne.s32.totalorder %s123, %s124
      %p138 = scmp.eq.s32.totalorder %s22, 1
      %p139 = por %p137, %p138
      %p141 = scmp.ne.s32.totalorder %s124, %s140
      %p142 = scmp.eq.s32.totalorder %s22, 0
      %p143 = por %p141, %p142
      %p144 = scmp.le.s32.totalorder 1, %s16
      %p145 = scmp.lt.s32.totalorder %s16, 3
      %p146 = pnand %p144, %p145
      %p147 = pneg %p146
      // Predicated region
      $region9: #{tpu_custom_call.1} parent=5 // pred_check
        _
      $region10: #{tpu_custom_call.1} parent=5 // pred_check_branch
        %149 = sbr.rel (%p146) target = $region12
      $region11: #{tpu_custom_call.1} parent=5 // pred_region
        %s150 = ssub.s32 %s16, 1
        // Predicated region
        $region13: #{tpu_custom_call.1} parent=11 // pred_check
          %p151 = pneg %p54
        $region14: #{tpu_custom_call.1} parent=11 // pred_check_branch
          %153 = sbr.rel (%p151) target = $region16
        $region15: #{tpu_custom_call.1} parent=11 // pred_region
          %s155 = ssub.s32 128, 128
          %156 = vsyncadd [#allocation3], %s155
          %s157 = smul.addr %s26, 128
          %s158 = scalar_lea.hbm %s0, %s157
          %s160 = sshll.u32 [#allocation2], 4
          %s161 = int_to_ptr.vmem [resolvable:$true] %s160
          %163 = dma.hbm_to_vmem [thread:$0]  %s158, 128, %s161, [#allocation3]
        $region16: #{tpu_custom_call.1} parent=11 // pred_fallthru
          _
      $region12: #{tpu_custom_call.1} parent=5 // pred_fallthru
        _
      %p164 = scmp.lt.s32.totalorder %s16, 2
      // Predicated region
      $region17: #{tpu_custom_call.1} parent=5 // pred_check
        %p165 = pneg %p164
      $region18: #{tpu_custom_call.1} parent=5 // pred_check_branch
        %167 = sbr.rel (%p165) target = $region20
      $region19: #{tpu_custom_call.1} parent=5 // pred_region
        // Predicated region
        $region21: #{tpu_custom_call.1} parent=19 // pred_check
          %p168 = pneg %p74
        $region22: #{tpu_custom_call.1} parent=19 // pred_check_branch
          %170 = sbr.rel (%p168) target = $region24
        $region23: #{tpu_custom_call.1} parent=19 // pred_region
          %s171 = sand.u32 %s16, 1
          %s172 = scalar_lea.sflag [#allocation6], %s171
          %s173 = sand.u32 %s64, 1
          %s174 = smul.addr %s173, 8
          %s175 = scalar_lea.vmem [#allocation5], %s174
          %s177 = ssub.s32 128, 128
          %178 = vsyncadd %s172, %s177
          %s179 = smul.addr %s23, 128
          %s180 = scalar_lea.hbm %s1, %s179
          %s182 = sshll.u32 %s175, 4
          %s183 = int_to_ptr.vmem [resolvable:$true] %s182
          %185 = dma.hbm_to_vmem [thread:$0]  %s180, 128, %s183, %s172
        $region24: #{tpu_custom_call.1} parent=19 // pred_fallthru
          _
        // Predicated region
        $region25: #{tpu_custom_call.1} parent=19 // pred_check
          %p186 = pneg %p102
        $region26: #{tpu_custom_call.1} parent=19 // pred_check_branch
          %188 = sbr.rel (%p186) target = $region28
        $region27: #{tpu_custom_call.1} parent=19 // pred_region
          %s189 = sand.u32 %s16, 1
          %s190 = scalar_lea.sflag [#allocation6], %s189
          %s191 = sand.u32 %s92, 1
          %s192 = smul.addr %s191, 8
          %s193 = scalar_lea.vmem [#allocation7], %s192
          %s195 = ssub.s32 128, 128
          %196 = vsyncadd %s190, %s195
          %s197 = sadd.s32 %s24, %s23
          %s198 = smul.addr %s197, 128
          %s199 = scalar_lea.hbm %s2, %s198
          %s201 = sshll.u32 %s193, 4
          %s202 = int_to_ptr.vmem [resolvable:$true] %s201
          %204 = dma.hbm_to_vmem [thread:$0]  %s199, 128, %s202, %s190
        $region28: #{tpu_custom_call.1} parent=19 // pred_fallthru
          _
      $region20: #{tpu_custom_call.1} parent=5 // pred_fallthru
        _
      %p205 = scmp.le.s32.totalorder 1, %s16
      %p206 = scmp.lt.s32.totalorder %s16, 3
      %p207 = pnand %p205, %p206
      %p208 = pneg %p207
      // Predicated region
      $region29: #{tpu_custom_call.1} parent=5 // pred_check
        _
      $region30: #{tpu_custom_call.1} parent=5 // pred_check_branch
        %210 = sbr.rel (%p207) target = $region32
      $region31: #{tpu_custom_call.1} parent=5 // pred_region
        %s211 = ssub.s32 %s16, 1
        // Predicated region
        $region33: #{tpu_custom_call.1} parent=31 // pred_check
          %p212 = pneg %p54
        $region34: #{tpu_custom_call.1} parent=31 // pred_check_branch
          %214 = sbr.rel (%p212) target = $region36
        $region35: #{tpu_custom_call.1} parent=31 // pred_region
          %215 = dma.done [#allocation3], 128
        $region36: #{tpu_custom_call.1} parent=31 // pred_fallthru
          _
        %s216 = sand.u32 %s21, 1
        %s217 = scalar_lea.sflag [#allocation6], %s216
        %s218 = sand.u32 %s67, 1
        %s219 = smul.addr %s218, 8
        %s220 = scalar_lea.vmem [#allocation5], %s219
        // Predicated region
        $region37: #{tpu_custom_call.1} parent=31 // pred_check
          %p221 = pneg %p80
        $region38: #{tpu_custom_call.1} parent=31 // pred_check_branch
          %223 = sbr.rel (%p221) target = $region40
        $region39: #{tpu_custom_call.1} parent=31 // pred_region
          %224 = dma.done %s217, 128
        $region40: #{tpu_custom_call.1} parent=31 // pred_fallthru
          _
        %s225 = sand.u32 %s21, 1
        %s226 = scalar_lea.sflag [#allocation6], %s225
        %s227 = sand.u32 %s95, 1
        %s228 = smul.addr %s227, 8
        %s229 = scalar_lea.vmem [#allocation7], %s228
        // Predicated region
        $region41: #{tpu_custom_call.1} parent=31 // pred_check
          %p230 = pneg %p108
        $region42: #{tpu_custom_call.1} parent=31 // pred_check_branch
          %232 = sbr.rel (%p230) target = $region44
        $region43: #{tpu_custom_call.1} parent=31 // pred_region
          %233 = dma.done %s226, 128
        $region44: #{tpu_custom_call.1} parent=31 // pred_fallthru
          _
        %p234 = pneg %p54
        %p235 = pneg %p51
        %s236 = sand.u32 %s21, 1
        %s237 = scalar_lea.sflag [#allocation6], %s236
        %s238 = sand.u32 %s67, 1
        %s239 = smul.addr %s238, 8
        %s240 = scalar_lea.vmem [#allocation5], %s239
        %p241 = pneg %p80
        %p242 = pneg %p77
        %s243 = sand.u32 %s21, 1
        %s244 = scalar_lea.sflag [#allocation6], %s243
        %s245 = sand.u32 %s95, 1
        %s246 = smul.addr %s245, 8
        %s247 = scalar_lea.vmem [#allocation7], %s246
        %p248 = pneg %p108
        %p249 = pneg %p105
        %p250 = pneg %p136
        %p251 = pneg %p133
        %s252 = sand.u32 %s123, 1
        %s253 = scalar_lea.sflag [#allocation4], %s252
        %s254 = sand.u32 %s123, 1
        %s255 = smul.addr %s254, 8
        %s256 = scalar_lea.vmem [#allocation8], %s255
        %v257 = vld [vmem:[#allocation2] sm:$0xff]
        %v258 = vld [vmem:[%s220] sm:$0xff]
        %vm259 = vcmask 64512
        %v261 = vsel %vm259, %v257, 0
        %263 = vmatprep.subr.mxu0 0.0
        %264 = vmatpush1.msra.mxu0 %v258
        %265 = vmatprep.subr.mxu0 0.0
        %266 = vmatpush1.msra.mxu0 0.0
        %267 = vmatprep.subr.mxu0 0.0
        %268 = vmatpush1.msra.mxu0 0.0
        %269 = vmatprep.subr.mxu0 0.0
        %270 = vmatpush1.msra.mxu0 0.0
        %271 = vmatprep.subr.mxu0 0.0
        %272 = vmatpush1.msra.mxu0 0.0
        %273 = vmatprep.subr.mxu0 0.0
        %274 = vmatpush1.msra.mxu0 0.0
        %275 = vmatprep.subr.mxu0 0.0
        %276 = vmatpush1.msra.mxu0 0.0
        %277 = vmatprep.subr.mxu0 0.0
        %278 = vmatpush1.msra.mxu0 0.0
        %279 = vmatprep.subr.mxu0 0.0
        %280 = vmatpush1.msra.mxu0 0.0
        %281 = vmatprep.subr.mxu0 0.0
        %282 = vmatpush1.msra.mxu0 0.0
        %283 = vmatprep.subr.mxu0 0.0
        %284 = vmatpush1.msra.mxu0 0.0
        %285 = vmatprep.subr.mxu0 0.0
        %286 = vmatpush1.msra.mxu0 0.0
        %287 = vmatprep.subr.mxu0 0.0
        %288 = vmatpush1.msra.mxu0 0.0
        %289 = vmatprep.subr.mxu0 0.0
        %290 = vmatpush1.msra.mxu0 0.0
        %291 = vmatprep.subr.mxu0 0.0
        %292 = vmatpush1.msra.mxu0 0.0
        %293 = vmatprep.subr.mxu0 0.0
        %294 = vmatpush1.msra.mxu0 0.0
        %295 = vmatprep.subr.mxu0 0.0
        %296 = vmatpush1.msra.mxu0 0.0
        %297 = vmatprep.subr.mxu0 0.0
        %298 = vmatpush1.msra.mxu0 0.0
        %299 = vmatprep.subr.mxu0 0.0
        %300 = vmatpush1.msra.mxu0 0.0
        %301 = vmatprep.subr.mxu0 0.0
        %302 = vmatpush1.msra.mxu0 0.0
        %303 = vmatprep.subr.mxu0 0.0
        %304 = vmatpush1.msra.mxu0 0.0
        %305 = vmatprep.subr.mxu0 0.0
        %306 = vmatpush1.msra.mxu0 0.0
        %307 = vmatprep.subr.mxu0 0.0
        %308 = vmatpush1.msra.mxu0 0.0
        %309 = vmatprep.subr.mxu0 0.0
        %310 = vmatpush1.msra.mxu0 0.0
        %311 = vmatprep.subr.mxu0 0.0
        %312 = vmatpush1.msra.mxu0 0.0
        %313 = vmatprep.subr.mxu0 0.0
        %314 = vmatpush1.msra.mxu0 0.0
        %315 = vmatprep.subr.mxu0 0.0
        %316 = vmatpush1.msra.mxu0 0.0
        %317 = vmatprep.subr.mxu0 0.0
        %318 = vmatpush1.msra.mxu0 0.0
        %319 = vmatprep.subr.mxu0 0.0
        %320 = vmatpush1.msra.mxu0 0.0
        %321 = vmatprep.subr.mxu0 0.0
        %322 = vmatpush1.msra.mxu0 0.0
        %323 = vmatprep.subr.mxu0 0.0
        %324 = vmatpush1.msra.mxu0 0.0
        %325 = vmatprep.subr.mxu0 0.0
        %326 = vmatpush1.msra.mxu0 0.0
        %327 = vmatprep.mubr.f32.mxu0 0.0
        %328 = vmatmul.mubr.f32.gmra.mrb[0].mxu0 %v261
        %v329 = vpop.f32.mrb[0].mxu0
        %v330 = vadd.f32 0.0, %v329
        %v331 = vpop.f32.mrb[0].mxu0
        %332 = vdwg.mxu0
        %334 = vrot.lane.b32.xlu0 %v330, 96
        %v335 = vpop.permute.xlu0 %334
        %v337 = vrcp.pop %v335
        %v338 = vmul.f32 %v330, %v337
        %v339 = vld [vmem:[%s229] sm:$0xff]
        %v340 = vmul.f32 %v339, %v338
        %vm341 = vcmask 261120
        %342 = vst.msk [vmem:[%s256] sm:$0xff] %vm341, %v340
        %s343 = sand.u32 %s123, 1
        %s344 = scalar_lea.sflag [#allocation4], %s343
        %s345 = sand.u32 %s123, 1
        %s346 = smul.addr %s345, 8
        %s347 = scalar_lea.vmem [#allocation8], %s346
        // Predicated region
        $region45: #{tpu_custom_call.1} parent=31 // pred_check
          %p348 = pneg %p133
        $region46: #{tpu_custom_call.1} parent=31 // pred_check_branch
          %350 = sbr.rel (%p348) target = $region48
        $region47: #{tpu_custom_call.1} parent=31 // pred_region
          %s352 = ssub.s32 128, 128
          %353 = vsyncadd %s344, %s352
          %s354 = sadd.s32 %s26, %s25
          %s355 = smul.addr %s354, 128
          %s356 = scalar_lea.hbm %s3, %s355
          %s358 = sshll.u32 %s347, 4
          %s359 = int_to_ptr.vmem [resolvable:$true] %s358
          %361 = dma.vmem_to_hbm [thread:$0]  %s359, 128, %s356, %s344
        $region48: #{tpu_custom_call.1} parent=31 // pred_fallthru
          _
      $region32: #{tpu_custom_call.1} parent=5 // pred_fallthru
        _
      %p362 = scmp.le.s32.totalorder 2, %s16
      // Predicated region
      $region49: #{tpu_custom_call.1} parent=5 // pred_check
        %p363 = pneg %p362
      $region50: #{tpu_custom_call.1} parent=5 // pred_check_branch
        %365 = sbr.rel (%p363) target = $region52
      $region51: #{tpu_custom_call.1} parent=5 // pred_region
        %s366 = ssub.s32 %s16, 2
        // Predicated region
        $region53: #{tpu_custom_call.1} parent=51 // pred_check
          %p367 = pneg %p139
        $region54: #{tpu_custom_call.1} parent=51 // pred_check_branch
          %369 = sbr.rel (%p367) target = $region56
        $region55: #{tpu_custom_call.1} parent=51 // pred_region
          %s370 = sand.u32 %s124, 1
          %s371 = scalar_lea.sflag [#allocation4], %s370
          %s372 = sand.u32 %s124, 1
          %s373 = smul.addr %s372, 8
          %s374 = scalar_lea.vmem [#allocation8], %s373
          %375 = dma.done %s371, 128
        $region56: #{tpu_custom_call.1} parent=51 // pred_fallthru
          _
      $region52: #{tpu_custom_call.1} parent=5 // pred_fallthru
        _
    $region6: #{tpu_custom_call.1} parent=1 // loop_footer
      %s20 = sadd.s32 1, %s16
    $region7: #{tpu_custom_call.1} parent=1 // loop_footer_branch
      %15 = sbr.rel target = $region3
    $region8: #{tpu_custom_call.1} parent=1 // loop_exit
      _
    %376 = vsyncpa [#allocation3], 1
    %s377 = scalar_lea.sflag [#allocation3], 1
    %378 = vsyncpa %s377, 1
    %379 = vsyncpa [#allocation6], 1
    %s380 = scalar_lea.sflag [#allocation6], 1
    %381 = vsyncpa %s380, 1
    %382 = vsyncpa [#allocation4], 1
    %s383 = scalar_lea.sflag [#allocation4], 1
    %384 = vsyncpa %s383, 1

</llo_original>
